<compile_context>
chip_gen: v7x
topology: tpu7x:2x2x1
jax: 0.10.0
libtpu: 0.0.40
codegen_flags: <defaults>
</compile_context>

<pallas_src>
import jax
import jax.numpy as jnp
from jax.experimental import pallas as pl
from jax.experimental.pallas import tpu as pltpu


def _round_up(x, m):
    return (x + m - 1) // m * m


def _choose_tiles(n):
    """Pick (tm, tk, n_padded) so tm | tk | n_padded and lanes are 128-dense."""
    n_p = _round_up(max(n, 1), 128)
    tk = 128
    for cand in (512, 256):
        if n_p % cand == 0 and n_p >= cand:
            tk = cand
            break
    tm = 256 if (tk % 256 == 0) else 128
    return tm, tk, n_p


# ----------------------------------------------------------------------------
# Stage 1: node projection  P = h @ W   (row-tiled over nodes)
# ----------------------------------------------------------------------------
def _proj_kernel(h_ref, w_ref, p_ref):
    p_ref[...] = jnp.dot(h_ref[...], w_ref[...],
                         preferred_element_type=jnp.float32)


# ----------------------------------------------------------------------------
# Stage 2: tiled mean aggregation over the adjacency + epilogue
#   acc (TM, OUT) accumulates A @ P over the src (k) axis,
#   deg (TM, 1)   accumulates in-degrees,
#   epilogue: out = ReLU(where(deg>0, acc/deg, P_dst) + b)
# ----------------------------------------------------------------------------
def _agg_kernel(adj_ref, p_src_ref, p_dst_ref, b_ref, out_ref, acc_ref, deg_ref):
    k = pl.program_id(1)

    @pl.when(k == 0)
    def _():
        acc_ref[...] = jnp.zeros_like(acc_ref)
        deg_ref[...] = jnp.zeros_like(deg_ref)

    adj = adj_ref[...]                                        # (TM, TK) bf16 0/1
    deg_ref[...] += jnp.sum(adj.astype(jnp.float32), axis=-1, keepdims=True)
    acc_ref[...] += jnp.dot(adj, p_src_ref[...].astype(jnp.bfloat16),
                            preferred_element_type=jnp.float32)

    @pl.when(k == pl.num_programs(1) - 1)
    def _():
        deg = deg_ref[...]                                    # (TM, 1)
        inv = pl.reciprocal(jnp.maximum(deg, 1.0), approx=True)
        mean = acc_ref[...] * inv
        # Degree-0 nodes keep their original (projected) feature.
        h_new = jnp.where(deg > 0.0, mean, p_dst_ref[...])
        out_ref[...] = jnp.maximum(h_new + b_ref[...], 0.0)


def gcn_forward(adj, eh, w_t, b):
    """adj: (N, N) f32 with adj[dst, src]=1, eh: (N, in_feats) f32,
    w_t: (in_feats, out_feats) f32 (pre-transposed Linear weight), b: (1, out_feats)."""
    n, in_feats = eh.shape
    out_feats = w_t.shape[1]

    tm, tk, n_p = _choose_tiles(n)
    in_p = _round_up(in_feats, 128)
    out_p = _round_up(out_feats, 128)

    # Zero-pad to TPU-friendly shapes.  Padded dst rows have degree 0 and are
    # sliced off; padded src columns / feature columns are zero so they never
    # contribute to the real outputs.
    adj_p = jnp.zeros((n_p, n_p), jnp.bfloat16).at[:n, :n].set(
        adj.astype(jnp.bfloat16))                             # 0/1 -> exact
    h_p = jnp.zeros((n_p, in_p), jnp.float32).at[:n, :in_feats].set(eh)
    w_p = jnp.zeros((in_p, out_p), jnp.float32).at[:in_feats, :out_feats].set(w_t)
    b_p = jnp.zeros((1, out_p), jnp.float32).at[:, :out_feats].set(b)

    # ---- Stage 1: P = h @ W -------------------------------------------------
    p = pl.pallas_call(
        _proj_kernel,
        out_shape=jax.ShapeDtypeStruct((n_p, out_p), jnp.float32),
        grid_spec=pltpu.PrefetchScalarGridSpec(
            num_scalar_prefetch=0,
            grid=(n_p // tm,),
            in_specs=[
                pl.BlockSpec((tm, in_p), lambda i: (i, 0)),
                pl.BlockSpec((in_p, out_p), lambda i: (0, 0)),
            ],
            out_specs=pl.BlockSpec((tm, out_p), lambda i: (i, 0)),
        ),
        compiler_params=pltpu.CompilerParams(
            dimension_semantics=("parallel",)),
        cost_estimate=pl.CostEstimate(
            flops=2 * n_p * in_p * out_p,
            transcendentals=0,
            bytes_accessed=(n_p * in_p + in_p * out_p + n_p * out_p) * 4),
    )(h_p, w_p)

    # ---- Stage 2: tiled mean-aggregation + epilogue --------------------------
    out_padded = pl.pallas_call(
        _agg_kernel,
        out_shape=jax.ShapeDtypeStruct((n_p, out_p), jnp.float32),
        grid_spec=pltpu.PrefetchScalarGridSpec(
            num_scalar_prefetch=0,
            grid=(n_p // tm, n_p // tk),
            in_specs=[
                pl.BlockSpec((tm, tk), lambda i, k: (i, k)),      # adjacency (bf16)
                pl.BlockSpec((tk, out_p), lambda i, k: (k, 0)),   # P, src rows
                pl.BlockSpec((tm, out_p), lambda i, k: (i, 0)),   # P, dst rows
                pl.BlockSpec((1, out_p), lambda i, k: (0, 0)),    # bias
            ],
            out_specs=pl.BlockSpec((tm, out_p), lambda i, k: (i, 0)),
            scratch_shapes=[
                pltpu.VMEM((tm, out_p), jnp.float32),             # A@P accumulator
                pltpu.VMEM((tm, 1), jnp.float32),                 # running degree
            ],
        ),
        compiler_params=pltpu.CompilerParams(
            dimension_semantics=("parallel", "arbitrary")),
        cost_estimate=pl.CostEstimate(
            flops=2 * n_p * n_p * out_p,
            transcendentals=0,
            bytes_accessed=(n_p * n_p * 2                         # adjacency (bf16)
                            + 2 * n_p * out_p * 4                 # P (src + dst)
                            + n_p * out_p * 4)),                  # output
    )(adj_p, p, p, b_p)

    return out_padded[:n, :out_feats]


def gcn_reference(adj, eh, w_t, b):
    deg = jnp.sum(adj, axis=-1, keepdims=True)
    agg = jnp.dot(adj, eh) / jnp.maximum(deg, 1.0)
    h_new = jnp.where(deg > 0.0, agg, eh)
    return jnp.maximum(jnp.dot(h_new, w_t) + b, 0.0)


if __name__ == "__main__":
    key = jax.random.PRNGKey(0)
    k_h, k_w, k_b, k_h2, k_w2, k_b2, k_a2 = jax.random.split(key, 7)

    # --- Test 1: shapes consistent with the module's usage --------------------
    # Fully connected graph (edges from itertools.permutations) over N scene
    # objects, in_feats = out_feats = 32.
    n_nodes, in_feats, out_feats = 8, 32, 32

    eh = jax.random.normal(k_h, (n_nodes, in_feats), dtype=jnp.float32)
    adj = (jnp.ones((n_nodes, n_nodes), dtype=jnp.float32)
           - jnp.eye(n_nodes, dtype=jnp.float32))              # no self-loops

    bound = 1.0 / jnp.sqrt(jnp.float32(in_feats))
    w_t = jax.random.uniform(k_w, (in_feats, out_feats), dtype=jnp.float32,
                             minval=-bound, maxval=bound)
    b = jax.random.uniform(k_b, (1, out_feats), dtype=jnp.float32,
                           minval=-bound, maxval=bound)

    out = gcn_forward(adj, eh, w_t, b)
    jax.block_until_ready(out)
    ref = gcn_reference(adj, eh, w_t, b)
    assert out.shape == (n_nodes, out_feats)
    # bf16 feature rounding on the aggregation matmul -> loosened tolerance.
    assert jnp.allclose(out, ref, atol=2e-2, rtol=2e-2), "mismatch vs reference (test 1)"

    # --- Test 2: larger graph exercising the tiled accumulation path ----------
    # (multiple k-tiles, feature padding, and degree-0 nodes).
    n2, in2, out2 = 300, 48, 40
    eh2 = jax.random.normal(k_h2, (n2, in2), dtype=jnp.float32)
    adj2 = (jax.random.uniform(k_a2, (n2, n2)) < 0.3).astype(jnp.float32)
    adj2 = adj2.at[0, :].set(0.0).at[5, :].set(0.0)            # degree-0 nodes
    bound2 = 1.0 / jnp.sqrt(jnp.float32(in2))
    w_t2 = jax.random.uniform(k_w2, (in2, out2), dtype=jnp.float32,
                              minval=-bound2, maxval=bound2)
    b2 = jax.random.uniform(k_b2, (1, out2), dtype=jnp.float32,
                            minval=-bound2, maxval=bound2)

    out2_arr = gcn_forward(adj2, eh2, w_t2, b2)
    jax.block_until_ready(out2_arr)
    ref2 = gcn_reference(adj2, eh2, w_t2, b2)
    assert out2_arr.shape == (n2, out2)
    assert jnp.allclose(out2_arr, ref2, atol=2e-2, rtol=2e-2), "mismatch vs reference (test 2)"

    print("KERNEL_OK")
</pallas_src>

<mosaic_0001>
module attributes {stable_mosaic.version = 11 : i64} {
  func.func @_proj_kernel(%arg0: i32, %arg1: memref<128x128xf32, #tpu.memory_space<vmem>>, %arg2: memref<128x128xf32, #tpu.memory_space<vmem>>, %arg3: memref<128x128xf32, #tpu.memory_space<vmem>>) attributes {dimension_semantics = [#tpu.dimension_semantics<parallel>], iteration_bounds = array<i64: 1>, scalar_prefetch = 0 : i64, scratch_operands = 0 : i64, tpu.core_type = #tpu.core_type<tc>, window_params = [{transform_indices = @transform_0, window_bounds = array<i64: 128, 128>}, {pipeline_mode = #tpu.pipeline_mode<synchronous>, transform_indices = @transform_1, window_bounds = array<i64: 128, 128>}, {transform_indices = @transform_2, window_bounds = array<i64: 128, 128>}]} {
    %c0 = arith.constant 0 : index
    %c0_0 = arith.constant 0 : index
    %0 = vector.load %arg1[%c0, %c0_0] : memref<128x128xf32, #tpu.memory_space<vmem>>, vector<128x128xf32>
    %c0_1 = arith.constant 0 : index
    %c0_2 = arith.constant 0 : index
    %1 = vector.load %arg2[%c0_1, %c0_2] : memref<128x128xf32, #tpu.memory_space<vmem>>, vector<128x128xf32>
    %cst = arith.constant dense<0.000000e+00> : vector<128x128xf32>
    %2 = tpu.matmul %0, %1, %cst {dimension_numbers = #tpu.dot_dimension_numbers<[1], [0], [0], [1], [0, 0, 1, 1], [], []>} : vector<128x128xf32>, vector<128x128xf32>, vector<128x128xf32> -> vector<128x128xf32>
    %c0_3 = arith.constant 0 : index
    %c0_4 = arith.constant 0 : index
    %3 = vector.load %arg3[%c0_3, %c0_4] : memref<128x128xf32, #tpu.memory_space<vmem>>, vector<128x128xf32>
    tpu.vector_store %arg3[%c0_3, %c0_4], %2 {strides = array<i32>} : memref<128x128xf32, #tpu.memory_space<vmem>>, vector<128x128xf32>,
    return
  }
  func.func @transform_0(%arg0: i32) -> (i32, i32) {
    %c0_i32 = arith.constant 0 : i32
    %c0_i32_0 = arith.constant 0 : i32
    return %arg0, %c0_i32 : i32, i32
  }
  func.func @transform_1(%arg0: i32) -> (i32, i32) {
    %c0_i32 = arith.constant 0 : i32
    %c0_i32_0 = arith.constant 0 : i32
    %c0_i32_1 = arith.constant 0 : i32
    return %c0_i32, %c0_i32_0 : i32, i32
  }
  func.func @transform_2(%arg0: i32) -> (i32, i32) {
    %c0_i32 = arith.constant 0 : i32
    %c0_i32_0 = arith.constant 0 : i32
    return %arg0, %c0_i32 : i32, i32
  }
}

</mosaic_0001>

<llo_original>
// kernel: tpu_custom_call.1
$region0: #{tpu_custom_call.1}
  #allocation0 [shape = 'u32[]', space=smem, size = 0x4, offset = 0x4, fixed_abs, tag = 'smem constant byte address 0x4 - core index']
  #allocation1 [shape = 'u32[144,128]{1,0:T(1,128)}', space=vmem, size = 0x12000, scoped, tag = 'internal scratch']
  %s0 = inlined_call_operand.hbm [shape: f32[128,128], index: 0, kind: input, shape index: {}]
  %s1 = inlined_call_operand.hbm [shape: f32[128,128], index: 1, kind: input, shape index: {}]
  %s2 = inlined_call_operand.hbm [shape: f32[128,128], index: 2, kind: output, shape index: {}]
  %s3 = sld [smem:[#allocation0]]
  $region26: #{tpu_custom_call.1} parent=0
    _
  %s5 = ssub.s32 1, %s3
  %s6 = scalar_select 0, %s5, %s3
  $region1: #{tpu_custom_call.1} parent=0
    #allocation2 [shape = 'u8[65536]{0}', space=vmem, size = 0x10000, scoped, tag = 'input window, operand 0, single buffered']
    #allocation3 [shape = 's32[1]{0}', space=sflag, size = 0x4, scoped, tag = 'scoped memory for tpu_custom_call.1']
    #allocation4 [shape = 's32[1]{0}', space=sflag, size = 0x4, scoped, tag = 'scoped memory for tpu_custom_call.1']
    #allocation5 [shape = 'u8[65536]{0}', space=vmem, size = 0x10000, scoped, tag = 'input window, operand 1, single buffered']
    #allocation6 [shape = 's32[1]{0}', space=sflag, size = 0x4, scoped, tag = 'scoped memory for tpu_custom_call.1']
    #allocation7 [shape = 'u8[65536]{0}', space=vmem, size = 0x10000, scoped, tag = 'output window, operand 0, single buffered']
    %7 = vsyncpa [#allocation3], 0
    %8 = vsyncpa [#allocation6], 0
    %9 = vsyncpa [#allocation4], 0
    // Predicated region
    $region2: #{tpu_custom_call.1} parent=1 // pred_check
      _
    $region3: #{tpu_custom_call.1} parent=1 // pred_check_branch
      %11 = sbr.rel (0) target = $region5
    $region4: #{tpu_custom_call.1} parent=1 // pred_region
      %s13 = ssub.s32 2048, 2048
      %14 = vsyncadd [#allocation3], %s13
      %s15 = sshll.u32 [#allocation2], 4
      %s16 = int_to_ptr.vmem [resolvable:$true] %s15
      %21 = dma.hbm_to_vmem [thread:$0]  %s0, 2048, %s16, [#allocation3], 128, 128, 8
    $region5: #{tpu_custom_call.1} parent=1 // pred_fallthru
      _
    // Predicated region
    $region6: #{tpu_custom_call.1} parent=1 // pred_check
      _
    $region7: #{tpu_custom_call.1} parent=1 // pred_check_branch
      %23 = sbr.rel (0) target = $region9
    $region8: #{tpu_custom_call.1} parent=1 // pred_region
      %s25 = ssub.s32 2048, 2048
      %26 = vsyncadd [#allocation6], %s25
      %s27 = sshll.u32 [#allocation5], 4
      %s28 = int_to_ptr.vmem [resolvable:$true] %s27
      %33 = dma.hbm_to_vmem [thread:$0]  %s1, 2048, %s28, [#allocation6], 128, 128, 8
    $region9: #{tpu_custom_call.1} parent=1 // pred_fallthru
      _
    // Predicated region
    $region10: #{tpu_custom_call.1} parent=1 // pred_check
      _
    $region11: #{tpu_custom_call.1} parent=1 // pred_check_branch
      %35 = sbr.rel (0) target = $region13
    $region12: #{tpu_custom_call.1} parent=1 // pred_region
      %36 = dma.done [#allocation3], 2048
    $region13: #{tpu_custom_call.1} parent=1 // pred_fallthru
      _
    // Predicated region
    $region14: #{tpu_custom_call.1} parent=1 // pred_check
      _
    $region15: #{tpu_custom_call.1} parent=1 // pred_check_branch
      %38 = sbr.rel (0) target = $region17
    $region16: #{tpu_custom_call.1} parent=1 // pred_region
      %39 = dma.done [#allocation6], 2048
    $region17: #{tpu_custom_call.1} parent=1 // pred_fallthru
      _
    %v40 = vld [vmem:[#allocation2] sm:$0xff]
    %v41 = vld [vmem:[#allocation2 + $0x8] sm:$0xff]
    %v42 = vld [vmem:[#allocation2 + $0x10] sm:$0xff]
    %v43 = vld [vmem:[#allocation2 + $0x18] sm:$0xff]
    %v44 = vld [vmem:[#allocation2 + $0x20] sm:$0xff]
    %v45 = vld [vmem:[#allocation2 + $0x28] sm:$0xff]
    %v46 = vld [vmem:[#allocation2 + $0x30] sm:$0xff]
    %v47 = vld [vmem:[#allocation2 + $0x38] sm:$0xff]
    %v48 = vld [vmem:[#allocation2 + $0x40] sm:$0xff]
    %v49 = vld [vmem:[#allocation2 + $0x48] sm:$0xff]
    %v50 = vld [vmem:[#allocation2 + $0x50] sm:$0xff]
    %v51 = vld [vmem:[#allocation2 + $0x58] sm:$0xff]
    %v52 = vld [vmem:[#allocation2 + $0x60] sm:$0xff]
    %v53 = vld [vmem:[#allocation2 + $0x68] sm:$0xff]
    %v54 = vld [vmem:[#allocation2 + $0x70] sm:$0xff]
    %v55 = vld [vmem:[#allocation2 + $0x78] sm:$0xff]
    %v56 = vld [vmem:[#allocation5] sm:$0xff]
    %v57 = vld [vmem:[#allocation5 + $0x8] sm:$0xff]
    %v58 = vld [vmem:[#allocation5 + $0x10] sm:$0xff]
    %v59 = vld [vmem:[#allocation5 + $0x18] sm:$0xff]
    %v60 = vld [vmem:[#allocation5 + $0x20] sm:$0xff]
    %v61 = vld [vmem:[#allocation5 + $0x28] sm:$0xff]
    %v62 = vld [vmem:[#allocation5 + $0x30] sm:$0xff]
    %v63 = vld [vmem:[#allocation5 + $0x38] sm:$0xff]
    %v64 = vld [vmem:[#allocation5 + $0x40] sm:$0xff]
    %v65 = vld [vmem:[#allocation5 + $0x48] sm:$0xff]
    %v66 = vld [vmem:[#allocation5 + $0x50] sm:$0xff]
    %v67 = vld [vmem:[#allocation5 + $0x58] sm:$0xff]
    %v68 = vld [vmem:[#allocation5 + $0x60] sm:$0xff]
    %v69 = vld [vmem:[#allocation5 + $0x68] sm:$0xff]
    %v70 = vld [vmem:[#allocation5 + $0x70] sm:$0xff]
    %v71 = vld [vmem:[#allocation5 + $0x78] sm:$0xff]
    %72 = vmatprep.subr.mxu0 0.0
    %73 = vmatpush1.msra.mxu0 %v56
    %74 = vmatprep.subr.mxu0 0.0
    %75 = vmatpush1.msra.mxu0 %v57
    %76 = vmatprep.subr.mxu0 0.0
    %77 = vmatpush1.msra.mxu0 %v58
    %78 = vmatprep.subr.mxu0 0.0
    %79 = vmatpush1.msra.mxu0 %v59
    %80 = vmatprep.subr.mxu0 0.0
    %81 = vmatpush1.msra.mxu0 %v60
    %82 = vmatprep.subr.mxu0 0.0
    %83 = vmatpush1.msra.mxu0 %v61
    %84 = vmatprep.subr.mxu0 0.0
    %85 = vmatpush1.msra.mxu0 %v62
    %86 = vmatprep.subr.mxu0 0.0
    %87 = vmatpush1.msra.mxu0 %v63
    %88 = vmatprep.subr.mxu0 0.0
    %89 = vmatpush1.msra.mxu0 %v64
    %90 = vmatprep.subr.mxu0 0.0
    %91 = vmatpush1.msra.mxu0 %v65
    %92 = vmatprep.subr.mxu0 0.0
    %93 = vmatpush1.msra.mxu0 %v66
    %94 = vmatprep.subr.mxu0 0.0
    %95 = vmatpush1.msra.mxu0 %v67
    %96 = vmatprep.subr.mxu0 0.0
    %97 = vmatpush1.msra.mxu0 %v68
    %98 = vmatprep.subr.mxu0 0.0
    %99 = vmatpush1.msra.mxu0 %v69
    %100 = vmatprep.subr.mxu0 0.0
    %101 = vmatpush1.msra.mxu0 %v70
    %102 = vmatprep.subr.mxu0 0.0
    %103 = vmatpush1.msra.mxu0 %v71
    %104 = vmatprep.subr.mxu0 0.0
    %105 = vmatpush1.msra.mxu0 0.0
    %106 = vmatprep.subr.mxu0 0.0
    %107 = vmatpush1.msra.mxu0 0.0
    %108 = vmatprep.subr.mxu0 0.0
    %109 = vmatpush1.msra.mxu0 0.0
    %110 = vmatprep.subr.mxu0 0.0
    %111 = vmatpush1.msra.mxu0 0.0
    %112 = vmatprep.subr.mxu0 0.0
    %113 = vmatpush1.msra.mxu0 0.0
    %114 = vmatprep.subr.mxu0 0.0
    %115 = vmatpush1.msra.mxu0 0.0
    %116 = vmatprep.subr.mxu0 0.0
    %117 = vmatpush1.msra.mxu0 0.0
    %118 = vmatprep.subr.mxu0 0.0
    %119 = vmatpush1.msra.mxu0 0.0
    %120 = vmatprep.subr.mxu0 0.0
    %121 = vmatpush1.msra.mxu0 0.0
    %122 = vmatprep.subr.mxu0 0.0
    %123 = vmatpush1.msra.mxu0 0.0
    %124 = vmatprep.subr.mxu0 0.0
    %125 = vmatpush1.msra.mxu0 0.0
    %126 = vmatprep.subr.mxu0 0.0
    %127 = vmatpush1.msra.mxu0 0.0
    %128 = vmatprep.subr.mxu0 0.0
    %129 = vmatpush1.msra.mxu0 0.0
    %130 = vmatprep.subr.mxu0 0.0
    %131 = vmatpush1.msra.mxu0 0.0
    %132 = vmatprep.subr.mxu0 0.0
    %133 = vmatpush1.msra.mxu0 0.0
    %134 = vmatprep.subr.mxu0 0.0
    %135 = vmatpush1.msra.mxu0 0.0
    %136 = vmatprep.mubr.f32.mxu0 0.0
    %137 = vmatmul.mubr.f32.gmra.mrb[0].mxu0 %v40
    %v138 = vpop.f32.mrb[0].mxu0
    %v139 = vadd.f32 0.0, %v138
    %v140 = vpop.f32.mrb[0].mxu0
    %141 = vmatprep.mubr.f32.mxu0 0.0
    %142 = vmatmul.mubr.f32.gmra.mrb[0].mxu0 %v41
    %v143 = vpop.f32.mrb[0].mxu0
    %v144 = vadd.f32 0.0, %v143
    %v145 = vpop.f32.mrb[0].mxu0
    %146 = vmatprep.mubr.f32.mxu0 0.0
    %147 = vmatmul.mubr.f32.gmra.mrb[0].mxu0 %v42
    %v148 = vpop.f32.mrb[0].mxu0
    %v149 = vadd.f32 0.0, %v148
    %v150 = vpop.f32.mrb[0].mxu0
    %151 = vmatprep.mubr.f32.mxu0 0.0
    %152 = vmatmul.mubr.f32.gmra.mrb[0].mxu0 %v43
    %v153 = vpop.f32.mrb[0].mxu0
    %v154 = vadd.f32 0.0, %v153
    %v155 = vpop.f32.mrb[0].mxu0
    %156 = vmatprep.mubr.f32.mxu0 0.0
    %157 = vmatmul.mubr.f32.gmra.mrb[0].mxu0 %v44
    %v158 = vpop.f32.mrb[0].mxu0
    %v159 = vadd.f32 0.0, %v158
    %v160 = vpop.f32.mrb[0].mxu0
    %161 = vmatprep.mubr.f32.mxu0 0.0
    %162 = vmatmul.mubr.f32.gmra.mrb[0].mxu0 %v45
    %v163 = vpop.f32.mrb[0].mxu0
    %v164 = vadd.f32 0.0, %v163
    %v165 = vpop.f32.mrb[0].mxu0
    %166 = vmatprep.mubr.f32.mxu0 0.0
    %167 = vmatmul.mubr.f32.gmra.mrb[0].mxu0 %v46
    %v168 = vpop.f32.mrb[0].mxu0
    %v169 = vadd.f32 0.0, %v168
    %v170 = vpop.f32.mrb[0].mxu0
    %171 = vmatprep.mubr.f32.mxu0 0.0
    %172 = vmatmul.mubr.f32.gmra.mrb[0].mxu0 %v47
    %v173 = vpop.f32.mrb[0].mxu0
    %v174 = vadd.f32 0.0, %v173
    %v175 = vpop.f32.mrb[0].mxu0
    %176 = vmatprep.mubr.f32.mxu0 0.0
    %177 = vmatmul.mubr.f32.gmra.mrb[0].mxu0 %v48
    %v178 = vpop.f32.mrb[0].mxu0
    %v179 = vadd.f32 0.0, %v178
    %v180 = vpop.f32.mrb[0].mxu0
    %181 = vmatprep.mubr.f32.mxu0 0.0
    %182 = vmatmul.mubr.f32.gmra.mrb[0].mxu0 %v49
    %v183 = vpop.f32.mrb[0].mxu0
    %v184 = vadd.f32 0.0, %v183
    %v185 = vpop.f32.mrb[0].mxu0
    %186 = vmatprep.mubr.f32.mxu0 0.0
    %187 = vmatmul.mubr.f32.gmra.mrb[0].mxu0 %v50
    %v188 = vpop.f32.mrb[0].mxu0
    %v189 = vadd.f32 0.0, %v188
    %v190 = vpop.f32.mrb[0].mxu0
    %191 = vmatprep.mubr.f32.mxu0 0.0
    %192 = vmatmul.mubr.f32.gmra.mrb[0].mxu0 %v51
    %v193 = vpop.f32.mrb[0].mxu0
    %v194 = vadd.f32 0.0, %v193
    %v195 = vpop.f32.mrb[0].mxu0
    %196 = vmatprep.mubr.f32.mxu0 0.0
    %197 = vmatmul.mubr.f32.gmra.mrb[0].mxu0 %v52
    %v198 = vpop.f32.mrb[0].mxu0
    %v199 = vadd.f32 0.0, %v198
    %v200 = vpop.f32.mrb[0].mxu0
    %201 = vmatprep.mubr.f32.mxu0 0.0
    %202 = vmatmul.mubr.f32.gmra.mrb[0].mxu0 %v53
    %v203 = vpop.f32.mrb[0].mxu0
    %v204 = vadd.f32 0.0, %v203
    %v205 = vpop.f32.mrb[0].mxu0
    %206 = vmatprep.mubr.f32.mxu0 0.0
    %207 = vmatmul.mubr.f32.gmra.mrb[0].mxu0 %v54
    %v208 = vpop.f32.mrb[0].mxu0
    %v209 = vadd.f32 0.0, %v208
    %v210 = vpop.f32.mrb[0].mxu0
    %211 = vmatprep.mubr.f32.mxu0 0.0
    %212 = vmatmul.mubr.f32.gmra.mrb[0].mxu0 %v55
    %v213 = vpop.f32.mrb[0].mxu0
    %v214 = vadd.f32 0.0, %v213
    %v215 = vpop.f32.mrb[0].mxu0
    %216 = vdwg.mxu0
    %217 = vst [vmem:[#allocation7] sm:$0xff] %v139
    %218 = vst [vmem:[#allocation7 + $0x8] sm:$0xff] %v144
    %219 = vst [vmem:[#allocation7 + $0x10] sm:$0xff] %v149
    %220 = vst [vmem:[#allocation7 + $0x18] sm:$0xff] %v154
    %221 = vst [vmem:[#allocation7 + $0x20] sm:$0xff] %v159
    %222 = vst [vmem:[#allocation7 + $0x28] sm:$0xff] %v164
    %223 = vst [vmem:[#allocation7 + $0x30] sm:$0xff] %v169
    %224 = vst [vmem:[#allocation7 + $0x38] sm:$0xff] %v174
    %225 = vst [vmem:[#allocation7 + $0x40] sm:$0xff] %v179
    %226 = vst [vmem:[#allocation7 + $0x48] sm:$0xff] %v184
    %227 = vst [vmem:[#allocation7 + $0x50] sm:$0xff] %v189
    %228 = vst [vmem:[#allocation7 + $0x58] sm:$0xff] %v194
    %229 = vst [vmem:[#allocation7 + $0x60] sm:$0xff] %v199
    %230 = vst [vmem:[#allocation7 + $0x68] sm:$0xff] %v204
    %231 = vst [vmem:[#allocation7 + $0x70] sm:$0xff] %v209
    %232 = vst [vmem:[#allocation7 + $0x78] sm:$0xff] %v214
    // Predicated region
    $region18: #{tpu_custom_call.1} parent=1 // pred_check
      _
    $region19: #{tpu_custom_call.1} parent=1 // pred_check_branch
      %234 = sbr.rel (0) target = $region21
    $region20: #{tpu_custom_call.1} parent=1 // pred_region
      %s236 = ssub.s32 2048, 2048
      %237 = vsyncadd [#allocation4], %s236
      %s238 = sshll.u32 [#allocation7], 4
      %s239 = int_to_ptr.vmem [resolvable:$true] %s238
      %244 = dma.vmem_to_hbm [thread:$0]  %s239, 2048, %s2, [#allocation4], 128, 128, 8
    $region21: #{tpu_custom_call.1} parent=1 // pred_fallthru
      _
    // Predicated region
    $region22: #{tpu_custom_call.1} parent=1 // pred_check
      _
    $region23: #{tpu_custom_call.1} parent=1 // pred_check_branch
      %246 = sbr.rel (0) target = $region25
    $region24: #{tpu_custom_call.1} parent=1 // pred_region
      %247 = dma.done [#allocation4], 2048
    $region25: #{tpu_custom_call.1} parent=1 // pred_fallthru
      _
    %248 = vsyncpa [#allocation3], 1
    %249 = vsyncpa [#allocation6], 1
    %250 = vsyncpa [#allocation4], 1

</llo_original>
